<compile_context>
chip_gen: v6e
topology: v6e:2x2x1
jax: 0.10.0
libtpu: 0.0.40
codegen_flags: <defaults>
</compile_context>

<pallas_src>
import functools
import math

import jax
import jax.numpy as jnp
from jax import lax
from jax.experimental import pallas as pl
from jax.experimental.pallas import tpu as pltpu


# ----------------------------------------------------------------------------
# Kernels
# ----------------------------------------------------------------------------
def _qkv_proj_kernel(x_ref, w_ref, b_ref, qkv_ref):
    """Fused Q/K/V projection: one bf16 MXU matmul, lane-dense (rows, 3*dim)."""
    xb = x_ref[...].astype(jnp.bfloat16)                 # bf16 MXU operand
    qkv = jnp.dot(xb, w_ref[...], preferred_element_type=jnp.float32)
    qkv_ref[...] = (qkv + b_ref[...]).astype(qkv_ref.dtype)   # bf16 out


def _attn_kernel(qkv_ref, adjT_ref, wo_ref, bo_ref, out_ref, acc_ref, *,
                 num_heads, head_dim, dim, block_dst):
    """All-heads graph attention + fused output linear for one dst-node tile."""
    i = pl.program_id(0)
    row0 = pl.multiple_of(i * block_dst, block_dst)

    qkv_all = qkv_ref[...]                               # (N, 3*dim) bf16, all srcs
    qkv_dst = qkv_ref[pl.ds(row0, block_dst), :]         # (Td, 3*dim) this dst tile

    # adjT[v, u] = 1 iff edge u -> v (shipped bf16, exact for {0,1}).
    # One f32 additive bias shared by every head: 0 on edges, -1e30 off edges.
    adj_t = adjT_ref[...].astype(jnp.float32)            # (Td, N)
    bias = (adj_t - jnp.float32(1.0)) * jnp.float32(1e30)
    # Guard for isolated dst rows (keeps the documented zero-output behavior).
    has_edge = (jnp.max(adj_t, axis=-1, keepdims=True) > 0).astype(jnp.float32)

    for h in range(num_heads):                           # static unroll over heads
        c0 = h * head_dim
        q_h = qkv_all[:, c0:c0 + head_dim]               # (N, hd) bf16, scale folded
        k_h = qkv_dst[:, dim + c0:dim + c0 + head_dim]   # (Td, hd) bf16
        v_h = qkv_all[:, 2 * dim + c0:2 * dim + c0 + head_dim]   # (N, hd) bf16

        # sT[v, u] = q[u] . k[v] — src reduction is the last (lane) axis, so
        # no NxN transpose is ever materialized.  bf16 operands, f32 acc.
        sT = lax.dot_general(k_h, q_h, (((1,), (1,)), ((), ())),
                             preferred_element_type=jnp.float32)  # (Td, N) f32
        sT = sT + bias
        m = jnp.max(sT, axis=-1, keepdims=True)          # (Td, 1) f32
        p = jnp.exp(sT - m)                              # f32 softmax math (VPU/EUP)
        denom = jnp.sum(p, axis=-1, keepdims=True)       # (Td, 1), >= 1 if any edge

        # Deferred normalization: aggregate first, then scale the small result.
        o_h = jnp.dot(p.astype(jnp.bfloat16), v_h,
                      preferred_element_type=jnp.float32)         # (Td, hd) f32
        scale = pl.reciprocal(denom, approx=True) * has_edge      # EUP slot
        # Static-lane-offset scratch write instead of jnp.concatenate.
        acc_ref[:, c0:c0 + head_dim] = (o_h * scale).astype(acc_ref.dtype)

    # Fused output linear from the bf16 head-major scratch; lane-dense store.
    y = jnp.dot(acc_ref[...], wo_ref[...],
                preferred_element_type=jnp.float32) + bo_ref[...]
    out_ref[...] = y.astype(out_ref.dtype)


# ----------------------------------------------------------------------------
# Wrappers
# ----------------------------------------------------------------------------
def pack_layer_params(wq, bq, wk, bk, wv, bv, wo, bo, *, num_heads):
    """Pre-transpose / pack nn.Linear params (bf16 MXU operands); fold
    1/sqrt(head_dim) into the Q columns & bias."""
    dim = wq.shape[1]
    head_dim = dim // num_heads
    scale = jnp.float32(1.0 / math.sqrt(head_dim))
    w_qkv = jnp.concatenate([wq.T * scale, wk.T, wv.T], axis=1).astype(jnp.bfloat16)
    b_qkv = jnp.concatenate([bq * scale, bk, bv])[None, :].astype(jnp.float32)
    w_o = wo.T.astype(jnp.bfloat16)                                 # (dim, dim_out)
    b_o = bo[None, :].astype(jnp.float32)                           # (1, dim_out)
    return w_qkv, b_qkv, w_o, b_o


def _pick_block(n, cap):
    """Largest multiple-of-8 divisor of n that is <= cap (or n if n <= cap)."""
    if n <= cap:
        return n
    b = (min(cap, n) // 8) * 8
    while b >= 8:
        if n % b == 0:
            return b
        b -= 8
    return n


def _default_blocks(N, dim, block_rows, block_dst):
    if block_rows is None:
        block_rows = _pick_block(N, 512)
    if block_dst is None:
        # v7x-safe VMEM budget: resident bf16 qkv + ~3 live (Td, N) f32 score
        # temporaries + double-buffered bf16 adjacency tile under ~32 MiB.
        qkv_bytes = N * 3 * dim * 2
        budget = 32 * 1024 * 1024 - qkv_bytes
        per_row = N * 24
        cap = max(8, budget // max(per_row, 1))
        block_dst = _pick_block(N, min(256, cap))
    return block_rows, block_dst


def transformer_attention_layer(x, adjT_bf16, packed, *, num_heads,
                                block_rows=None, block_dst=None):
    """One TransformerAttentionModule.forward (eval mode, dense adjacency)."""
    N, dim = x.shape
    assert dim % num_heads == 0
    head_dim = dim // num_heads
    w_qkv, b_qkv, w_o, b_o = packed
    dim_out = w_o.shape[1]

    block_rows, block_dst = _default_blocks(N, dim, block_rows, block_dst)
    assert N % block_rows == 0 and N % block_dst == 0
    assert block_rows == N or block_rows % 8 == 0
    assert block_dst == N or block_dst % 8 == 0

    # Pass 1: fused QKV projection, row tiled, lane-dense bf16 output.
    qkv = pl.pallas_call(
        _qkv_proj_kernel,
        out_shape=jax.ShapeDtypeStruct((N, 3 * dim), jnp.bfloat16),
        grid=(N // block_rows,),
        in_specs=[
            pl.BlockSpec((block_rows, dim), lambda r: (r, 0)),
            pl.BlockSpec((dim, 3 * dim), lambda r: (0, 0)),
            pl.BlockSpec((1, 3 * dim), lambda r: (0, 0)),
        ],
        out_specs=pl.BlockSpec((block_rows, 3 * dim), lambda r: (r, 0)),
        compiler_params=pltpu.CompilerParams(
            dimension_semantics=("parallel",),
            vmem_limit_bytes=32 * 1024 * 1024),
    )(x, w_qkv, b_qkv)

    # Pass 2: all-heads attention + output linear, tiled over destination nodes.
    kern = functools.partial(_attn_kernel, num_heads=num_heads,
                             head_dim=head_dim, dim=dim, block_dst=block_dst)
    out = pl.pallas_call(
        kern,
        out_shape=jax.ShapeDtypeStruct((N, dim_out), jnp.float32),
        grid=(N // block_dst,),
        in_specs=[
            pl.BlockSpec((N, 3 * dim), lambda i: (0, 0)),      # qkv (all sources)
            pl.BlockSpec((block_dst, N), lambda i: (i, 0)),    # adjT tile (streamed)
            pl.BlockSpec((dim, dim_out), lambda i: (0, 0)),    # W_out (pre-transposed)
            pl.BlockSpec((1, dim_out), lambda i: (0, 0)),      # b_out
        ],
        out_specs=pl.BlockSpec((block_dst, dim_out), lambda i: (i, 0)),
        scratch_shapes=[pltpu.VMEM((block_dst, dim), jnp.bfloat16)],  # head-major attn
        compiler_params=pltpu.CompilerParams(
            dimension_semantics=("parallel",),
            vmem_limit_bytes=48 * 1024 * 1024),
    )(qkv, adjT_bf16, w_o, b_o)
    return out


def gt_forward(x, adj, packed_layers, *, num_heads, block_rows=None, block_dst=None):
    """GT.forward with default flags: a stack of attention layers (eval mode).

    Returns (mid, out, homo_heads) mirroring the torch module; with
    output_layer=False, mid == out, and homo_heads is [] (graph_analysis off).
    """
    adjT = jnp.asarray(adj).T.astype(jnp.bfloat16)       # dst-major, bf16 mask
    for packed in packed_layers:
        x = transformer_attention_layer(x, adjT, packed, num_heads=num_heads,
                                        block_rows=block_rows, block_dst=block_dst)
    mid = x
    out = x[:, 0] if x.shape[1] == 1 else x              # torch `.squeeze(1)`
    return mid, out, []


# ----------------------------------------------------------------------------
# Pure-JAX reference (mirrors the torch/DGL forward, f32 end-to-end)
# ----------------------------------------------------------------------------
def _layer_reference(x, adj, raw_params, num_heads):
    wq, bq, wk, bk, wv, bv, wo, bo = raw_params
    N, dim = x.shape
    hd = dim // num_heads
    q = (x @ wq.T + bq).reshape(N, num_heads, hd)
    k = (x @ wk.T + bk).reshape(N, num_heads, hd)
    v = (x @ wv.T + bv).reshape(N, num_heads, hd)
    s = jnp.einsum('uhd,vhd->huv', q, k) / math.sqrt(hd)
    mask = (adj > 0)[None]                                # (1, N_src, N_dst)
    s = jnp.where(mask, s, -jnp.inf)
    a = jax.nn.softmax(s, axis=1)                         # softmax over sources
    a = jnp.where(mask, a, 0.0)
    out = jnp.einsum('huv,uhd->vhd', a, v).reshape(N, dim)
    return out @ wo.T + bo


def _gt_reference(x, adj, raw_layers, num_heads):
    for rp in raw_layers:
        x = _layer_reference(x, adj, rp, num_heads)
    return x


# ----------------------------------------------------------------------------
# Self-test
# ----------------------------------------------------------------------------
if __name__ == "__main__":
    N = 32            # graph nodes
    nfeat = 64
    nhid = 64
    nclass = 8
    num_heads = 8     # GT default -> head_dim = 8
    n_layers = 2
    block = 16        # exercises 2-step grids in both passes

    key = jax.random.PRNGKey(0)
    k_x, k_adj, k_p = jax.random.split(key, 3)

    x = jax.random.normal(k_x, (N, nfeat), dtype=jnp.float32)

    # Deterministic random directed graph with self-loops (every dst has an edge).
    rand_adj = (jax.random.uniform(k_adj, (N, N)) < 0.25).astype(jnp.float32)
    adj = jnp.maximum(rand_adj, jnp.eye(N, dtype=jnp.float32))

    # Per-layer nn.Linear-style parameters (synthetic, deterministic).
    layer_dims = []
    for i in range(n_layers):
        in_hidden = nfeat if i == 0 else nhid
        out_hidden = nclass if i == n_layers - 1 else nhid
        layer_dims.append((in_hidden, out_hidden))

    raw_layers = []
    for (din, dout), kk in zip(layer_dims, jax.random.split(k_p, n_layers)):
        ks = jax.random.split(kk, 8)
        s_in = 1.0 / math.sqrt(din)
        raw_layers.append((
            jax.random.uniform(ks[0], (din, din), minval=-s_in, maxval=s_in),
            jax.random.uniform(ks[1], (din,), minval=-s_in, maxval=s_in),
            jax.random.uniform(ks[2], (din, din), minval=-s_in, maxval=s_in),
            jax.random.uniform(ks[3], (din,), minval=-s_in, maxval=s_in),
            jax.random.uniform(ks[4], (din, din), minval=-s_in, maxval=s_in),
            jax.random.uniform(ks[5], (din,), minval=-s_in, maxval=s_in),
            jax.random.uniform(ks[6], (dout, din), minval=-s_in, maxval=s_in),
            jax.random.uniform(ks[7], (dout,), minval=-s_in, maxval=s_in),
        ))

    packed_layers = [pack_layer_params(*rp, num_heads=num_heads) for rp in raw_layers]

    # Run once with explicit small blocks (multi-step grids)...
    mid, out, homo = gt_forward(x, adj, packed_layers, num_heads=num_heads,
                                block_rows=block, block_dst=block)
    out = jax.block_until_ready(out)
    # ...and once with the default (auto) tiling path.
    _, out_auto, _ = gt_forward(x, adj, packed_layers, num_heads=num_heads)
    out_auto = jax.block_until_ready(out_auto)

    ref = _gt_reference(x, adj, raw_layers, num_heads)
    ref = jax.block_until_ready(ref)

    assert out.shape == (N, nclass), out.shape
    # bf16 MXU operands + approx reciprocal -> compare with a relaxed tolerance.
    err = jnp.max(jnp.abs(out - ref))
    assert jnp.allclose(out, ref, atol=2e-2, rtol=2e-2), f"max abs err = {err}"
    err_auto = jnp.max(jnp.abs(out_auto - ref))
    assert jnp.allclose(out_auto, ref, atol=2e-2, rtol=2e-2), f"max abs err = {err_auto}"
    assert jnp.allclose(mid, out), "mid must equal final output with default flags"

    print("KERNEL_OK")
</pallas_src>

<mosaic_0001>
module attributes {stable_mosaic.version = 11 : i64} {
  func.func @_qkv_proj_kernel(%arg0: i32, %arg1: memref<16x64xf32, #tpu.memory_space<vmem>>, %arg2: memref<64x192xbf16, #tpu.memory_space<vmem>>, %arg3: memref<1x192xf32, #tpu.memory_space<vmem>>, %arg4: memref<16x192xbf16, #tpu.memory_space<vmem>>) attributes {dimension_semantics = [#tpu.dimension_semantics<parallel>], iteration_bounds = array<i64: 2>, scalar_prefetch = 0 : i64, scratch_operands = 0 : i64, tpu.core_type = #tpu.core_type<tc>, window_params = [{transform_indices = @transform_0, window_bounds = array<i64: 16, 64>}, {pipeline_mode = #tpu.pipeline_mode<synchronous>, transform_indices = @transform_1, window_bounds = array<i64: 64, 192>}, {pipeline_mode = #tpu.pipeline_mode<synchronous>, transform_indices = @transform_2, window_bounds = array<i64: 1, 192>}, {transform_indices = @transform_3, window_bounds = array<i64: 16, 192>}]} {
    %c0 = arith.constant 0 : index
    %c0_0 = arith.constant 0 : index
    %0 = vector.load %arg1[%c0, %c0_0] : memref<16x64xf32, #tpu.memory_space<vmem>>, vector<16x64xf32>
    %1 = arith.truncf %0 : vector<16x64xf32> to vector<16x64xbf16>
    %c0_1 = arith.constant 0 : index
    %c0_2 = arith.constant 0 : index
    %2 = vector.load %arg2[%c0_1, %c0_2] : memref<64x192xbf16, #tpu.memory_space<vmem>>, vector<64x192xbf16>
    %cst = arith.constant dense<0.000000e+00> : vector<16x192xf32>
    %3 = tpu.matmul %1, %2, %cst {dimension_numbers = #tpu.dot_dimension_numbers<[1], [0], [0], [1], [0, 0, 1, 1], [], []>} : vector<16x64xbf16>, vector<64x192xbf16>, vector<16x192xf32> -> vector<16x192xf32>
    %c0_3 = arith.constant 0 : index
    %c0_4 = arith.constant 0 : index
    %4 = vector.load %arg3[%c0_3, %c0_4] : memref<1x192xf32, #tpu.memory_space<vmem>>, vector<1x192xf32>
    %5 = vector.broadcast %4 : vector<1x192xf32> to vector<16x192xf32>
    %6 = arith.addf %3, %5 : vector<16x192xf32>
    %7 = arith.truncf %6 : vector<16x192xf32> to vector<16x192xbf16>
    %c0_5 = arith.constant 0 : index
    %c0_6 = arith.constant 0 : index
    %8 = vector.load %arg4[%c0_5, %c0_6] : memref<16x192xbf16, #tpu.memory_space<vmem>>, vector<16x192xbf16>
    tpu.vector_store %arg4[%c0_5, %c0_6], %7 {strides = array<i32>} : memref<16x192xbf16, #tpu.memory_space<vmem>>, vector<16x192xbf16>,
    return
  }
  func.func @transform_0(%arg0: i32) -> (i32, i32) {
    %c0_i32 = arith.constant 0 : i32
    %c0_i32_0 = arith.constant 0 : i32
    return %arg0, %c0_i32 : i32, i32
  }
  func.func @transform_1(%arg0: i32) -> (i32, i32) {
    %c0_i32 = arith.constant 0 : i32
    %c0_i32_0 = arith.constant 0 : i32
    %c0_i32_1 = arith.constant 0 : i32
    return %c0_i32, %c0_i32_0 : i32, i32
  }
  func.func @transform_2(%arg0: i32) -> (i32, i32) {
    %c0_i32 = arith.constant 0 : i32
    %c0_i32_0 = arith.constant 0 : i32
    %c0_i32_1 = arith.constant 0 : i32
    return %c0_i32, %c0_i32_0 : i32, i32
  }
  func.func @transform_3(%arg0: i32) -> (i32, i32) {
    %c0_i32 = arith.constant 0 : i32
    %c0_i32_0 = arith.constant 0 : i32
    return %arg0, %c0_i32 : i32, i32
  }
}

</mosaic_0001>

<llo_original>
// kernel: tpu_custom_call.1
$region0: #{tpu_custom_call.1}
  #allocation0 [shape = 'u32[]', space=smem, size = 0x4, offset = 0x4, fixed_abs, tag = 'smem constant byte address 0x4 - core index']
  #allocation1 [shape = 'u32[144,128]{1,0:T(1,128)}', space=vmem, size = 0x12000, scoped, tag = 'internal scratch']
  %s0 = inlined_call_operand.hbm [shape: f32[32,64], index: 0, kind: input, shape index: {}]
  %s1 = inlined_call_operand.hbm [shape: bf16[64,192], index: 1, kind: input, shape index: {}]
  %s2 = inlined_call_operand.vmem [shape: f32[1,192], index: 2, kind: input, shape index: {}]
  %s3 = inlined_call_operand.hbm [shape: bf16[32,192], index: 3, kind: output, shape index: {}]
  %s4 = sld [smem:[#allocation0]]
  $region53: #{tpu_custom_call.1} parent=0
    _
  %s6 = ssub.s32 1, %s4
  %s7 = scalar_select 0, %s6, %s4
  $region1: #{tpu_custom_call.1} parent=0
    #allocation2 [shape = 'u8[16384]{0}', space=vmem, size = 0x4000, scoped, tag = 'input window, operand 0']
    #allocation3 [shape = 's32[2]{0}', space=sflag, size = 0x8, scoped, tag = 'scoped memory for tpu_custom_call.1']
    #allocation4 [shape = 's32[2]{0}', space=sflag, size = 0x8, scoped, tag = 'scoped memory for tpu_custom_call.1']
    #allocation5 [shape = 'u8[32768]{0}', space=vmem, size = 0x8000, scoped, tag = 'input window, operand 1, single buffered']
    #allocation6 [shape = 's32[1]{0}', space=sflag, size = 0x4, scoped, tag = 'scoped memory for tpu_custom_call.1']
    #allocation7 [shape = 'u8[16384]{0}', space=vmem, size = 0x4000, scoped, tag = 'output window, operand 0']
    %8 = vsyncpa [#allocation3], 0
    %s9 = scalar_lea.sflag [#allocation3], 1
    %10 = vsyncpa %s9, 0
    %11 = vsyncpa [#allocation6], 0
    %12 = vsyncpa [#allocation4], 0
    %s13 = scalar_lea.sflag [#allocation4], 1
    %14 = vsyncpa %s13, 0
    loop: start=0, step=1, limit=4
    $region2: #{tpu_custom_call.1} parent=1 // loop_pre_header
      _
    $region3: #{tpu_custom_call.1} parent=1 // loop_header
      %s16 = sphi 0, %s20
      %p17 = scmp.ge.s32.totalorder %s16, 4
      %s26 = sphi 0, %s28
      %s29 = sphi 0, %s26
      %s30 = sphi 0, %s29
      %s46 = sphi 0, %s30
      %s50 = sphi 0, %s50
      %s52 = sphi 0, %s50
      %s53 = sphi 0, %s52
      %s67 = sphi 0, %s53
      %s71 = sphi 0, %s71
      %s73 = sphi 0, %s71
      %s74 = sphi 0, %s73
      %s88 = sphi 0, %s74
      %s94 = sphi 0, %s96
      %s97 = sphi 0, %s94
      %s98 = sphi 0, %s97
      %s114 = sphi 0, %s98
    $region4: #{tpu_custom_call.1} parent=1 // loop_header_branch
      %19 = sbr.rel (%p17) target = $region8
    $region5: #{tpu_custom_call.1} parent=1 // loop_body
      %s21 = ssub.s32 %s16, 1
      %s22 = ssub.s32 %s16, 2
      %s23 = sadd.s32 %s16, 1
      %s24 = ssub.s32 %s16, %s23
      %p25 = scmp.eq.s32.totalorder %s24, 0
      %s27 = sadd.s32 %s26, 1
      %s28 = scalar_select %p25, %s26, %s27
      %p31 = pneg %p25
      %p32 = scmp.eq.s32.totalorder %s16, 1
      %p33 = por %p31, %p32
      %p34 = scmp.ne.s32.totalorder %s26, %s29
      %p35 = scmp.eq.s32.totalorder %s16, 0
      %p36 = por %p34, %p35
      %p37 = scmp.ne.s32.totalorder %s26, %s29
      %p38 = scmp.eq.s32.totalorder %s21, 1
      %p39 = por %p37, %p38
      %p40 = scmp.ne.s32.totalorder %s29, %s30
      %p41 = scmp.eq.s32.totalorder %s21, 0
      %p42 = por %p40, %p41
      %p43 = scmp.ne.s32.totalorder %s29, %s30
      %p44 = scmp.eq.s32.totalorder %s22, 1
      %p45 = por %p43, %p44
      %p47 = scmp.ne.s32.totalorder %s30, %s46
      %p48 = scmp.eq.s32.totalorder %s22, 0
      %p49 = por %p47, %p48
      %s51 = sadd.s32 %s50, 1
      %p54 = scmp.eq.s32.totalorder %s16, 1
      %p55 = scmp.ne.s32.totalorder %s50, %s52
      %p56 = scmp.eq.s32.totalorder %s16, 0
      %p57 = por %p55, %p56
      %p58 = scmp.ne.s32.totalorder %s50, %s52
      %p59 = scmp.eq.s32.totalorder %s21, 1
      %p60 = por %p58, %p59
      %p61 = scmp.ne.s32.totalorder %s52, %s53
      %p62 = scmp.eq.s32.totalorder %s21, 0
      %p63 = por %p61, %p62
      %p64 = scmp.ne.s32.totalorder %s52, %s53
      %p65 = scmp.eq.s32.totalorder %s22, 1
      %p66 = por %p64, %p65
      %p68 = scmp.ne.s32.totalorder %s53, %s67
      %p69 = scmp.eq.s32.totalorder %s22, 0
      %p70 = por %p68, %p69
      %s72 = sadd.s32 %s71, 1
      %p75 = scmp.eq.s32.totalorder %s16, 1
      %p76 = scmp.ne.s32.totalorder %s71, %s73
      %p77 = scmp.eq.s32.totalorder %s16, 0
      %p78 = por %p76, %p77
      %p79 = scmp.ne.s32.totalorder %s71, %s73
      %p80 = scmp.eq.s32.totalorder %s21, 1
      %p81 = por %p79, %p80
      %p82 = scmp.ne.s32.totalorder %s73, %s74
      %p83 = scmp.eq.s32.totalorder %s21, 0
      %p84 = por %p82, %p83
      %p85 = scmp.ne.s32.totalorder %s73, %s74
      %p86 = scmp.eq.s32.totalorder %s22, 1
      %p87 = por %p85, %p86
      %p89 = scmp.ne.s32.totalorder %s74, %s88
      %p90 = scmp.eq.s32.totalorder %s22, 0
      %p91 = por %p89, %p90
      %s92 = ssub.s32 %s16, %s23
      %p93 = scmp.eq.s32.totalorder %s92, 0
      %s95 = sadd.s32 %s94, 1
      %s96 = scalar_select %p93, %s94, %s95
      %p99 = pneg %p93
      %p100 = scmp.eq.s32.totalorder %s16, 1
      %p101 = por %p99, %p100
      %p102 = scmp.ne.s32.totalorder %s94, %s97
      %p103 = scmp.eq.s32.totalorder %s16, 0
      %p104 = por %p102, %p103
      %p105 = scmp.ne.s32.totalorder %s94, %s97
      %p106 = scmp.eq.s32.totalorder %s21, 1
      %p107 = por %p105, %p106
      %p108 = scmp.ne.s32.totalorder %s97, %s98
      %p109 = scmp.eq.s32.totalorder %s21, 0
      %p110 = por %p108, %p109
      %p111 = scmp.ne.s32.totalorder %s97, %s98
      %p112 = scmp.eq.s32.totalorder %s22, 1
      %p113 = por %p111, %p112
      %p115 = scmp.ne.s32.totalorder %s98, %s114
      %p116 = scmp.eq.s32.totalorder %s22, 0
      %p117 = por %p115, %p116
      %p118 = scmp.le.s32.totalorder 1, %s16
      %p119 = scmp.lt.s32.totalorder %s16, 3
      %p120 = pnand %p118, %p119
      %p121 = pneg %p120
      // Predicated region
      $region9: #{tpu_custom_call.1} parent=5 // pred_check
        _
      $region10: #{tpu_custom_call.1} parent=5 // pred_check_branch
        %123 = sbr.rel (%p120) target = $region12
      $region11: #{tpu_custom_call.1} parent=5 // pred_region
        %s124 = ssub.s32 %s16, 1
        // Predicated region
        $region13: #{tpu_custom_call.1} parent=11 // pred_check
          %p125 = pneg %p63
        $region14: #{tpu_custom_call.1} parent=11 // pred_check_branch
          %127 = sbr.rel (%p125) target = $region16
        $region15: #{tpu_custom_call.1} parent=11 // pred_region
          %s129 = ssub.s32 1024, 1024
          %130 = vsyncadd [#allocation6], %s129
          %s131 = sshll.u32 [#allocation5], 4
          %s132 = int_to_ptr.vmem [resolvable:$true] %s131
          %137 = dma.hbm_to_vmem [thread:$0]  %s1, 1024, %s132, [#allocation6], 128, 128, 8
        $region16: #{tpu_custom_call.1} parent=11 // pred_fallthru
          _
        // Predicated region
        $region17: #{tpu_custom_call.1} parent=11 // pred_check
          %p138 = pneg %p84
        $region18: #{tpu_custom_call.1} parent=11 // pred_check_branch
          %140 = sbr.rel (%p138) target = $region20
        $region19: #{tpu_custom_call.1} parent=11 // pred_region
          _
        $region20: #{tpu_custom_call.1} parent=11 // pred_fallthru
          _
      $region12: #{tpu_custom_call.1} parent=5 // pred_fallthru
        _
      %p141 = scmp.lt.s32.totalorder %s16, 2
      // Predicated region
      $region21: #{tpu_custom_call.1} parent=5 // pred_check
        %p142 = pneg %p141
      $region22: #{tpu_custom_call.1} parent=5 // pred_check_branch
        %144 = sbr.rel (%p142) target = $region24
      $region23: #{tpu_custom_call.1} parent=5 // pred_region
        // Predicated region
        $region25: #{tpu_custom_call.1} parent=23 // pred_check
          %p145 = pneg %p36
        $region26: #{tpu_custom_call.1} parent=23 // pred_check_branch
          %147 = sbr.rel (%p145) target = $region28
        $region27: #{tpu_custom_call.1} parent=23 // pred_region
          %s148 = sand.u32 %s26, 1
          %s149 = scalar_lea.sflag [#allocation3], %s148
          %s150 = sand.u32 %s26, 1
          %s151 = smul.addr %s150, 16
          %s152 = scalar_lea.vmem [#allocation2], %s151
          %s153 = smul.u32 2, %s16
          %s155 = ssub.s32 256, 256
          %156 = vsyncadd %s149, %s155
          %s157 = smul.addr %s153, 128
          %s158 = scalar_lea.hbm %s0, %s157
          %s159 = sshll.u32 %s152, 4
          %s160 = int_to_ptr.vmem [resolvable:$true] %s159
          %165 = dma.hbm_to_vmem [thread:$0]  %s158, 256, %s160, %s149, 128, 128, 8
        $region28: #{tpu_custom_call.1} parent=23 // pred_fallthru
          _
      $region24: #{tpu_custom_call.1} parent=5 // pred_fallthru
        _
      %p166 = scmp.le.s32.totalorder 1, %s16
      %p167 = scmp.lt.s32.totalorder %s16, 3
      %p168 = pnand %p166, %p167
      %p169 = pneg %p168
      // Predicated region
      $region29: #{tpu_custom_call.1} parent=5 // pred_check
        _
      $region30: #{tpu_custom_call.1} parent=5 // pred_check_branch
        %171 = sbr.rel (%p168) target = $region32
      $region31: #{tpu_custom_call.1} parent=5 // pred_region
        %s172 = ssub.s32 %s16, 1
        %s173 = sand.u32 %s29, 1
        %s174 = scalar_lea.sflag [#allocation3], %s173
        %s175 = sand.u32 %s29, 1
        %s176 = smul.addr %s175, 16
        %s177 = scalar_lea.vmem [#allocation2], %s176
        // Predicated region
        $region33: #{tpu_custom_call.1} parent=31 // pred_check
          %p178 = pneg %p42
        $region34: #{tpu_custom_call.1} parent=31 // pred_check_branch
          %180 = sbr.rel (%p178) target = $region36
        $region35: #{tpu_custom_call.1} parent=31 // pred_region
          %181 = dma.done %s174, 256
        $region36: #{tpu_custom_call.1} parent=31 // pred_fallthru
          _
        // Predicated region
        $region37: #{tpu_custom_call.1} parent=31 // pred_check
          %p182 = pneg %p63
        $region38: #{tpu_custom_call.1} parent=31 // pred_check_branch
          %184 = sbr.rel (%p182) target = $region40
        $region39: #{tpu_custom_call.1} parent=31 // pred_region
          %185 = dma.done [#allocation6], 1024
        $region40: #{tpu_custom_call.1} parent=31 // pred_fallthru
          _
        %s186 = sand.u32 %s29, 1
        %s187 = scalar_lea.sflag [#allocation3], %s186
        %s188 = sand.u32 %s29, 1
        %s189 = smul.addr %s188, 16
        %s190 = scalar_lea.vmem [#allocation2], %s189
        %p191 = pneg %p42
        %p192 = pneg %p39
        %p193 = pneg %p63
        %p194 = pneg %p60
        %p195 = pneg %p84
        %p196 = pneg %p81
        %p197 = pneg %p110
        %p198 = pneg %p107
        %s199 = sand.u32 %s97, 1
        %s200 = scalar_lea.sflag [#allocation4], %s199
        %s201 = sand.u32 %s97, 1
        %s202 = smul.addr %s201, 16
        %s203 = scalar_lea.vmem [#allocation7], %s202
        %s204 = smul.u32 2, %s21
        %s205 = smul.u32 2, %s21
        %v207 = vld [vmem:[%s177] sm:$0xff]
        %v208 = vld [vmem:[%s177 + $0x8] sm:$0xff]
        %v209 = vpack.c.bf16 %v208, %v207
        %v210 = vld [vmem:[#allocation5] sm:$0xff]
        %v211 = vld [vmem:[#allocation5 + $0x8] sm:$0xff]
        %v212 = vld [vmem:[#allocation5 + $0x10] sm:$0xff]
        %v213 = vld [vmem:[#allocation5 + $0x18] sm:$0xff]
        %v214 = vld [vmem:[#allocation5 + $0x20] sm:$0xff]
        %v215 = vld [vmem:[#allocation5 + $0x28] sm:$0xff]
        %v216 = vld [vmem:[#allocation5 + $0x30] sm:$0xff]
        %v217 = vld [vmem:[#allocation5 + $0x38] sm:$0xff]
        %v218 = vld [vmem:[%s2] sm:$0x3]
        %v220 = vlaneseq
        %v221 = vshrl.u32 %v220, 7
        %v222 = vsub.s32 0, %v221
        %v223 = vrot.slane %v218, %v222
        %v224 = vlaneseq
        %v225 = vshrl.u32 %v224, 7
        %v226 = vsub.s32 1, %v225
        %v227 = vrot.slane %v218, %v226
        %v238 = vunpack.c.l.b16 %v210
        %v239 = vunpack.c.h.b16 %v210
        %v240 = vunpack.c.l.b16 %v211
        %v241 = vunpack.c.h.b16 %v211
        %v242 = vunpack.c.l.b16 %v212
        %v243 = vunpack.c.h.b16 %v212
        %v244 = vunpack.c.l.b16 %v213
        %v245 = vunpack.c.h.b16 %v213
        %v246 = vunpack.c.l.b16 %v214
        %v247 = vunpack.c.h.b16 %v214
        %v248 = vunpack.c.l.b16 %v215
        %v249 = vunpack.c.h.b16 %v215
        %v250 = vunpack.c.l.b16 %v216
        %v251 = vunpack.c.h.b16 %v216
        %v252 = vunpack.c.l.b16 %v217
        %v253 = vunpack.c.h.b16 %v217
        %v254 = vpack.c.b16 %v240, %v238
        %v255 = vpack.c.b16 %v241, %v239
        %v256 = vpack.c.b16 %v244, %v242
        %v257 = vpack.c.b16 %v245, %v243
        %v258 = vpack.c.b16 %v248, %v246
        %v259 = vpack.c.b16 %v249, %v247
        %v260 = vpack.c.b16 %v252, %v250
        %v261 = vpack.c.b16 %v253, %v251
        %vm270 = vcmask 523264
        %v272 = vsel %vm270, %v209, 0
        %274 = vmatprep.subr.bf16.mxu0 0
        %275 = vmatpush1.bf16.msra.mxu0 0
        %276 = vmatprep.subr.bf16.mxu0 0
        %277 = vmatpush1.bf16.msra.mxu0 0
        %278 = vmatprep.subr.bf16.mxu0 0
        %279 = vmatpush1.bf16.msra.mxu0 0
        %280 = vmatprep.subr.bf16.mxu0 0
        %281 = vmatpush1.bf16.msra.mxu0 0
        %282 = vmatprep.subr.bf16.mxu0 %v261
        %283 = vmatpush1.bf16.msra.mxu0 %v260
        %284 = vmatprep.subr.bf16.mxu0 %v259
        %285 = vmatpush1.bf16.msra.mxu0 %v258
        %286 = vmatprep.subr.bf16.mxu0 %v257
        %287 = vmatpush1.bf16.msra.mxu0 %v256
        %288 = vmatprep.subr.bf16.mxu0 %v255
        %289 = vmatpush1.bf16.msra.mxu0 %v254
        %290 = vmatprep.subr.bf16.mxu0 0
        %291 = vmatpush2.bf16.msra.mxu0 0
        %292 = vmatprep.subr.bf16.mxu0 0
        %293 = vmatpush2.bf16.msra.mxu0 0
        %294 = vmatprep.subr.bf16.mxu0 0
        %295 = vmatpush2.bf16.msra.mxu0 0
        %296 = vmatprep.subr.bf16.mxu0 0
        %297 = vmatpush2.bf16.msra.mxu0 0
        %298 = vmatprep.subr.bf16.mxu0 0
        %299 = vmatpush2.bf16.msra.mxu0 0
        %300 = vmatprep.subr.bf16.mxu0 0
        %301 = vmatpush2.bf16.msra.mxu0 0
        %302 = vmatprep.subr.bf16.mxu0 0
        %303 = vmatpush2.bf16.msra.mxu0 0
        %304 = vmatprep.subr.bf16.mxu0 0
        %305 = vmatpush2.bf16.msra.mxu0 0
        %306 = vmatprep.mubr.bf16.mxu0 0
        %307 = vmatmul.mubr.bf16.gmra.mxu0 %v272
        %v308 = vpop.f32.mrf.mxu0
        %v309 = vadd.f32 %v223, %v308
        %v310 = vpop.f32.mrf.mxu0
        %v311 = vadd.f32 %v227, %v310
        %v312 = vpop.f32.mrf.mxu0
        %v313 = vadd.f32 %v223, %v312
        %v314 = vpop.f32.mrf.mxu0
        %v315 = vadd.f32 %v227, %v314
        %316 = vdwg.mxu0
        %v317 = vpack.c.bf16 %v313, %v309
        %v318 = vpack.c.bf16 %v315, %v311
        %v321 = vunpack.c.l.b16 %v317
        %v322 = vunpack.c.l.b16 %v318
        %v323 = vunpack.c.h.b16 %v317
        %v324 = vunpack.c.h.b16 %v318
        %v325 = vpack.c.b16 %v322, %v321
        %v326 = vpack.c.b16 %v324, %v323
        %vm329 = vcmask 1043456
        %vm330 = vcmask 523268
        %vm331 = vmor %vm330, %vm329
        %332 = vst.msk [vmem:[%s203] sm:$0xff] %vm331, %v325
        %333 = vst.msk [vmem:[%s203 + $0x8] sm:$0xff] %vm331, %v326
        %s334 = sand.u32 %s97, 1
        %s335 = scalar_lea.sflag [#allocation4], %s334
        %s336 = sand.u32 %s97, 1
        %s337 = smul.addr %s336, 16
        %s338 = scalar_lea.vmem [#allocation7], %s337
        // Predicated region
        $region41: #{tpu_custom_call.1} parent=31 // pred_check
          %p339 = pneg %p107
        $region42: #{tpu_custom_call.1} parent=31 // pred_check_branch
          %341 = sbr.rel (%p339) target = $region44
        $region43: #{tpu_custom_call.1} parent=31 // pred_region
          %s342 = smul.u32 2, %s21
          %s344 = ssub.s32 256, 256
          %345 = vsyncadd %s335, %s344
          %s346 = smul.addr %s342, 2
          %s347 = smul.addr %s346, 64
          %s348 = scalar_lea.hbm %s3, %s347
          %s349 = sshll.u32 %s338, 4
          %s350 = int_to_ptr.vmem [resolvable:$true] %s349
          %355 = dma.vmem_to_hbm [thread:$0]  %s350, 256, %s348, %s335, 128, 128, 8
        $region44: #{tpu_custom_call.1} parent=31 // pred_fallthru
          _
      $region32: #{tpu_custom_call.1} parent=5 // pred_fallthru
        _
      %p356 = scmp.le.s32.totalorder 2, %s16
      // Predicated region
      $region45: #{tpu_custom_call.1} parent=5 // pred_check
        %p357 = pneg %p356
      $region46: #{tpu_custom_call.1} parent=5 // pred_check_branch
        %359 = sbr.rel (%p357) target = $region48
      $region47: #{tpu_custom_call.1} parent=5 // pred_region
        %s360 = ssub.s32 %s16, 2
        // Predicated region
        $region49: #{tpu_custom_call.1} parent=47 // pred_check
          %p361 = pneg %p113
        $region50: #{tpu_custom_call.1} parent=47 // pred_check_branch
          %363 = sbr.rel (%p361) target = $region52
        $region51: #{tpu_custom_call.1} parent=47 // pred_region
          %s364 = sand.u32 %s98, 1
          %s365 = scalar_lea.sflag [#allocation4], %s364
          %s366 = sand.u32 %s98, 1
          %s367 = smul.addr %s366, 16
          %s368 = scalar_lea.vmem [#allocation7], %s367
          %369 = dma.done %s365, 256
        $region52: #{tpu_custom_call.1} parent=47 // pred_fallthru
          _
      $region48: #{tpu_custom_call.1} parent=5 // pred_fallthru
        _
    $region6: #{tpu_custom_call.1} parent=1 // loop_footer
      %s20 = sadd.s32 1, %s16
    $region7: #{tpu_custom_call.1} parent=1 // loop_footer_branch
      %15 = sbr.rel target = $region3
    $region8: #{tpu_custom_call.1} parent=1 // loop_exit
      _
    %370 = vsyncpa [#allocation3], 1
    %s371 = scalar_lea.sflag [#allocation3], 1
    %372 = vsyncpa %s371, 1
    %373 = vsyncpa [#allocation6], 1
    %374 = vsyncpa [#allocation4], 1
    %s375 = scalar_lea.sflag [#allocation4], 1
    %376 = vsyncpa %s375, 1

</llo_original>
